<compile_context>
chip_gen: v5e
topology: v5e:2x2
jax: 0.10.0
libtpu: 0.0.40
codegen_flags: <defaults>
</compile_context>

<pallas_src>
import functools

import jax
import jax.numpy as jnp
from jax.experimental import pallas as pl
from jax.experimental.pallas import tpu as pltpu


def _round_up(n, m):
    return ((n + m - 1) // m) * m


def _pick_tiling(batch, tile_b_max):
    """Return (tile_b, n_tiles, padded_batch).

    Avoids batch padding when possible; prefers >= 2 (ideally 4) grid steps so
    v7x's two TensorCores both get work and each pipelines its tiles."""
    if batch <= tile_b_max:
        for n in (4, 2):
            t = batch // n
            if batch % n == 0 and t % 8 == 0 and t >= 256:
                return t, n, batch
        # Single tile covering the whole batch: block dim == full array dim is
        # always a legal BlockSpec, no padding needed.
        return batch, 1, batch
    tile = tile_b_max
    padded = _round_up(batch, tile)
    return tile, padded // tile, padded


def critic_mlp_kernel(x_ref,
                      w1_ref, b1_ref,
                      w2_ref, b2_ref,
                      w3_ref, b3_ref,
                      w4_ref, b4_ref,
                      o_ref):
    # Whole MLP hot path runs out of VMEM; matmuls on the MXU in bf16 with
    # f32 accumulation, bias adds in f32, ReLUs on bf16 vregs.
    x = x_ref[...].astype(jnp.bfloat16)  # free in-kernel VPU cast

    h = jnp.dot(x, w1_ref[...], preferred_element_type=jnp.float32) + b1_ref[...]
    h = jnp.maximum(h.astype(jnp.bfloat16), jnp.bfloat16(0))

    h = jnp.dot(h, w2_ref[...], preferred_element_type=jnp.float32) + b2_ref[...]
    h = jnp.maximum(h.astype(jnp.bfloat16), jnp.bfloat16(0))

    h = jnp.dot(h, w3_ref[...], preferred_element_type=jnp.float32) + b3_ref[...]
    h = jnp.maximum(h.astype(jnp.bfloat16), jnp.bfloat16(0))

    out = jnp.dot(h, w4_ref[...], preferred_element_type=jnp.float32) + b4_ref[...]
    o_ref[...] = out  # narrow (num_agents-wide) f32 store


def prepare_critic_params(params):
    """One-time weight prep (do NOT call per forward).

    bf16 weights in (in, out) layout; layer-3 output / layer-4 input padded
    64 -> 128 with zeros (extra w3 cols + b3 lanes are zero and extra w4 rows
    are zero, so the result is numerically unchanged); biases kept f32."""
    (w1, b1), (w2, b2), (w3, b3), (w4, b4) = params
    pad3 = 128 - w3.shape[1]
    w3p = jnp.pad(w3, ((0, 0), (0, pad3)))
    b3p = jnp.pad(b3, ((0, 0), (0, pad3)))
    w4p = jnp.pad(w4, ((0, 128 - w4.shape[0]), (0, 0)))
    return (
        w1.astype(jnp.bfloat16), b1.astype(jnp.float32),
        w2.astype(jnp.bfloat16), b2.astype(jnp.float32),
        w3p.astype(jnp.bfloat16), b3p.astype(jnp.float32),
        w4p.astype(jnp.bfloat16), b4.astype(jnp.float32),
    )


@functools.partial(jax.jit, static_argnames=("tile_b_max",))
def critic_forward(x, prepped, *, tile_b_max=4096):
    """x: (batch, num_states) f32. prepped: output of prepare_critic_params."""
    w1, b1, w2, b2, w3, b3, w4, b4 = prepped
    batch, num_states = x.shape
    num_agents = w4.shape[1]

    tile_b, n_tiles, padded_batch = _pick_tiling(batch, tile_b_max)
    if padded_batch != batch:
        # Only hit when batch > tile_b_max and not a multiple of it.
        x = jnp.pad(x, ((0, padded_batch - batch), (0, 0)))

    # Weights/biases: constant index_map -> VMEM-resident across the grid
    # (< 150 KiB total, trivially fits).
    resident = lambda a: pl.BlockSpec(a.shape, lambda i: (0,) * a.ndim)

    flops = 2 * padded_batch * (num_states * 256 + 256 * 128
                                + 128 * 128 + 128 * num_agents)
    bytes_accessed = (
        x.size * 4                                              # f32 input
        + (w1.size + w2.size + w3.size + w4.size) * 2           # bf16 weights
        + (b1.size + b2.size + b3.size + b4.size) * 4           # f32 biases
        + padded_batch * num_agents * 4                         # narrow f32 out
    )

    out = pl.pallas_call(
        critic_mlp_kernel,
        out_shape=jax.ShapeDtypeStruct((padded_batch, num_agents), jnp.float32),
        grid=(n_tiles,),
        in_specs=[
            pl.BlockSpec((tile_b, num_states), lambda i: (i, 0)),
            resident(w1), resident(b1),
            resident(w2), resident(b2),
            resident(w3), resident(b3),
            resident(w4), resident(b4),
        ],
        out_specs=pl.BlockSpec((tile_b, num_agents), lambda i: (i, 0)),
        compiler_params=pltpu.CompilerParams(
            dimension_semantics=("parallel",),
            vmem_limit_bytes=32 * 1024 * 1024,
        ),
        cost_estimate=pl.CostEstimate(
            flops=flops, transcendentals=0, bytes_accessed=bytes_accessed),
    )(x, w1, b1, w2, b2, w3, b3, w4, b4)

    if padded_batch != batch:
        out = out[:batch]
    return out


def init_critic_params(key, num_states, num_agents):
    """Deterministic init mimicking PyTorch nn.Linear (uniform +-1/sqrt(fan_in)).

    Weights stored as (in_features, out_features); biases as (1, out)."""
    dims = [(num_states, 256), (256, 128), (128, 64), (64, num_agents)]
    params = []
    for (fan_in, fan_out) in dims:
        key, kw, kb = jax.random.split(key, 3)
        bound = 1.0 / jnp.sqrt(float(fan_in))
        w = jax.random.uniform(kw, (fan_in, fan_out), jnp.float32, -bound, bound)
        b = jax.random.uniform(kb, (1, fan_out), jnp.float32, -bound, bound)
        params.append((w, b))
    return params


def critic_reference_f32(x, params):
    h = x
    for i, (w, b) in enumerate(params):
        h = h @ w + b
        if i < len(params) - 1:
            h = jnp.maximum(h, 0.0)
    return h


def critic_reference_bf16(x, params):
    """Same bf16-operand / f32-accumulate numerics as the kernel."""
    h = x.astype(jnp.bfloat16)
    for i, (w, b) in enumerate(params):
        h = jnp.dot(h, w.astype(jnp.bfloat16),
                    preferred_element_type=jnp.float32) + b
        if i < len(params) - 1:
            h = jnp.maximum(h, 0.0).astype(jnp.bfloat16)
    return h


if __name__ == "__main__":
    num_states = 32
    num_agents = 4
    batch = 8  # small demo shape; the kernel tiles/pipelines at large batch

    key = jax.random.PRNGKey(0)
    key, kx = jax.random.split(key)
    x = jax.random.normal(kx, (batch, num_states), jnp.float32)

    params = init_critic_params(key, num_states, num_agents)
    prepped = prepare_critic_params(params)   # one-time: bf16 + 64->128 padding

    out = critic_forward(x, prepped)
    out = jax.block_until_ready(out)
    assert out.shape == (batch, num_agents)

    # Tight check vs. a reference using identical bf16-operand numerics.
    ref_bf16 = critic_reference_bf16(x, params)
    assert jnp.allclose(out, ref_bf16, atol=2e-3, rtol=2e-3), \
        "mismatch vs bf16-operand JAX reference"

    # Loose check vs. the full-f32 PyTorch-equivalent reference (bf16 operands
    # change numerics slightly).
    ref_f32 = critic_reference_f32(x, params)
    assert jnp.allclose(out, ref_f32, atol=5e-2, rtol=5e-2), \
        "mismatch vs f32 JAX reference"

    print("KERNEL_OK")
</pallas_src>

<mosaic_0001>
module attributes {stable_mosaic.version = 11 : i64} {
  func.func @critic_mlp_kernel(%arg0: i32, %arg1: memref<8x32xf32, #tpu.memory_space<vmem>>, %arg2: memref<32x256xbf16, #tpu.memory_space<vmem>>, %arg3: memref<1x256xf32, #tpu.memory_space<vmem>>, %arg4: memref<256x128xbf16, #tpu.memory_space<vmem>>, %arg5: memref<1x128xf32, #tpu.memory_space<vmem>>, %arg6: memref<128x128xbf16, #tpu.memory_space<vmem>>, %arg7: memref<1x128xf32, #tpu.memory_space<vmem>>, %arg8: memref<128x4xbf16, #tpu.memory_space<vmem>>, %arg9: memref<1x4xf32, #tpu.memory_space<vmem>>, %arg10: memref<8x4xf32, #tpu.memory_space<vmem>>) attributes {dimension_semantics = [#tpu.dimension_semantics<parallel>], iteration_bounds = array<i64: 1>, scalar_prefetch = 0 : i64, scratch_operands = 0 : i64, tpu.core_type = #tpu.core_type<tc>, window_params = [{transform_indices = @transform_0, window_bounds = array<i64: 8, 32>}, {pipeline_mode = #tpu.pipeline_mode<synchronous>, transform_indices = @transform_1, window_bounds = array<i64: 32, 256>}, {pipeline_mode = #tpu.pipeline_mode<synchronous>, transform_indices = @transform_2, window_bounds = array<i64: 1, 256>}, {pipeline_mode = #tpu.pipeline_mode<synchronous>, transform_indices = @transform_3, window_bounds = array<i64: 256, 128>}, {pipeline_mode = #tpu.pipeline_mode<synchronous>, transform_indices = @transform_4, window_bounds = array<i64: 1, 128>}, {pipeline_mode = #tpu.pipeline_mode<synchronous>, transform_indices = @transform_5, window_bounds = array<i64: 128, 128>}, {pipeline_mode = #tpu.pipeline_mode<synchronous>, transform_indices = @transform_6, window_bounds = array<i64: 1, 128>}, {pipeline_mode = #tpu.pipeline_mode<synchronous>, transform_indices = @transform_7, window_bounds = array<i64: 128, 4>}, {pipeline_mode = #tpu.pipeline_mode<synchronous>, transform_indices = @transform_8, window_bounds = array<i64: 1, 4>}, {transform_indices = @transform_9, window_bounds = array<i64: 8, 4>}]} {
    %c0 = arith.constant 0 : index
    %c0_0 = arith.constant 0 : index
    %0 = vector.load %arg1[%c0, %c0_0] : memref<8x32xf32, #tpu.memory_space<vmem>>, vector<8x32xf32>
    %1 = arith.truncf %0 : vector<8x32xf32> to vector<8x32xbf16>
    %c0_1 = arith.constant 0 : index
    %c0_2 = arith.constant 0 : index
    %2 = vector.load %arg2[%c0_1, %c0_2] : memref<32x256xbf16, #tpu.memory_space<vmem>>, vector<32x256xbf16>
    %cst = arith.constant dense<0.000000e+00> : vector<8x256xf32>
    %3 = tpu.matmul %1, %2, %cst {dimension_numbers = #tpu.dot_dimension_numbers<[1], [0], [0], [1], [0, 0, 1, 1], [], []>} : vector<8x32xbf16>, vector<32x256xbf16>, vector<8x256xf32> -> vector<8x256xf32>
    %c0_3 = arith.constant 0 : index
    %c0_4 = arith.constant 0 : index
    %4 = vector.load %arg3[%c0_3, %c0_4] : memref<1x256xf32, #tpu.memory_space<vmem>>, vector<1x256xf32>
    %5 = vector.broadcast %4 : vector<1x256xf32> to vector<8x256xf32>
    %6 = arith.addf %3, %5 : vector<8x256xf32>
    %7 = arith.truncf %6 : vector<8x256xf32> to vector<8x256xbf16>
    %cst_5 = arith.constant 0.000000e+00 : bf16
    %8 = vector.broadcast %cst_5 : bf16 to vector<8x256xbf16>
    %9 = arith.maximumf %7, %8 : vector<8x256xbf16>
    %c0_6 = arith.constant 0 : index
    %c0_7 = arith.constant 0 : index
    %10 = vector.load %arg4[%c0_6, %c0_7] : memref<256x128xbf16, #tpu.memory_space<vmem>>, vector<256x128xbf16>
    %cst_8 = arith.constant dense<0.000000e+00> : vector<8x128xf32>
    %11 = tpu.matmul %9, %10, %cst_8 {dimension_numbers = #tpu.dot_dimension_numbers<[1], [0], [0], [1], [0, 0, 1, 1], [], []>} : vector<8x256xbf16>, vector<256x128xbf16>, vector<8x128xf32> -> vector<8x128xf32>
    %c0_9 = arith.constant 0 : index
    %c0_10 = arith.constant 0 : index
    %12 = vector.load %arg5[%c0_9, %c0_10] : memref<1x128xf32, #tpu.memory_space<vmem>>, vector<1x128xf32>
    %13 = vector.broadcast %12 : vector<1x128xf32> to vector<8x128xf32>
    %14 = arith.addf %11, %13 : vector<8x128xf32>
    %15 = arith.truncf %14 : vector<8x128xf32> to vector<8x128xbf16>
    %cst_11 = arith.constant 0.000000e+00 : bf16
    %16 = vector.broadcast %cst_11 : bf16 to vector<8x128xbf16>
    %17 = arith.maximumf %15, %16 : vector<8x128xbf16>
    %c0_12 = arith.constant 0 : index
    %c0_13 = arith.constant 0 : index
    %18 = vector.load %arg6[%c0_12, %c0_13] : memref<128x128xbf16, #tpu.memory_space<vmem>>, vector<128x128xbf16>
    %cst_14 = arith.constant dense<0.000000e+00> : vector<8x128xf32>
    %19 = tpu.matmul %17, %18, %cst_14 {dimension_numbers = #tpu.dot_dimension_numbers<[1], [0], [0], [1], [0, 0, 1, 1], [], []>} : vector<8x128xbf16>, vector<128x128xbf16>, vector<8x128xf32> -> vector<8x128xf32>
    %c0_15 = arith.constant 0 : index
    %c0_16 = arith.constant 0 : index
    %20 = vector.load %arg7[%c0_15, %c0_16] : memref<1x128xf32, #tpu.memory_space<vmem>>, vector<1x128xf32>
    %21 = vector.broadcast %20 : vector<1x128xf32> to vector<8x128xf32>
    %22 = arith.addf %19, %21 : vector<8x128xf32>
    %23 = arith.truncf %22 : vector<8x128xf32> to vector<8x128xbf16>
    %cst_17 = arith.constant 0.000000e+00 : bf16
    %24 = vector.broadcast %cst_17 : bf16 to vector<8x128xbf16>
    %25 = arith.maximumf %23, %24 : vector<8x128xbf16>
    %c0_18 = arith.constant 0 : index
    %c0_19 = arith.constant 0 : index
    %26 = vector.load %arg8[%c0_18, %c0_19] : memref<128x4xbf16, #tpu.memory_space<vmem>>, vector<128x4xbf16>
    %cst_20 = arith.constant dense<0.000000e+00> : vector<8x4xf32>
    %27 = tpu.matmul %25, %26, %cst_20 {dimension_numbers = #tpu.dot_dimension_numbers<[1], [0], [0], [1], [0, 0, 1, 1], [], []>} : vector<8x128xbf16>, vector<128x4xbf16>, vector<8x4xf32> -> vector<8x4xf32>
    %c0_21 = arith.constant 0 : index
    %c0_22 = arith.constant 0 : index
    %28 = vector.load %arg9[%c0_21, %c0_22] : memref<1x4xf32, #tpu.memory_space<vmem>>, vector<1x4xf32>
    %29 = vector.broadcast %28 : vector<1x4xf32> to vector<8x4xf32>
    %30 = arith.addf %27, %29 : vector<8x4xf32>
    %c0_23 = arith.constant 0 : index
    %c0_24 = arith.constant 0 : index
    %31 = vector.load %arg10[%c0_23, %c0_24] : memref<8x4xf32, #tpu.memory_space<vmem>>, vector<8x4xf32>
    tpu.vector_store %arg10[%c0_23, %c0_24], %30 {strides = array<i32>} : memref<8x4xf32, #tpu.memory_space<vmem>>, vector<8x4xf32>,
    return
  }
  func.func @transform_0(%arg0: i32) -> (i32, i32) {
    %c0_i32 = arith.constant 0 : i32
    %c0_i32_0 = arith.constant 0 : i32
    return %arg0, %c0_i32 : i32, i32
  }
  func.func @transform_1(%arg0: i32) -> (i32, i32) {
    %c0_i32 = arith.constant 0 : i32
    %c0_i32_0 = arith.constant 0 : i32
    %c0_i32_1 = arith.constant 0 : i32
    return %c0_i32, %c0_i32_0 : i32, i32
  }
  func.func @transform_2(%arg0: i32) -> (i32, i32) {
    %c0_i32 = arith.constant 0 : i32
    %c0_i32_0 = arith.constant 0 : i32
    %c0_i32_1 = arith.constant 0 : i32
    return %c0_i32, %c0_i32_0 : i32, i32
  }
  func.func @transform_3(%arg0: i32) -> (i32, i32) {
    %c0_i32 = arith.constant 0 : i32
    %c0_i32_0 = arith.constant 0 : i32
    %c0_i32_1 = arith.constant 0 : i32
    return %c0_i32, %c0_i32_0 : i32, i32
  }
  func.func @transform_4(%arg0: i32) -> (i32, i32) {
    %c0_i32 = arith.constant 0 : i32
    %c0_i32_0 = arith.constant 0 : i32
    %c0_i32_1 = arith.constant 0 : i32
    return %c0_i32, %c0_i32_0 : i32, i32
  }
  func.func @transform_5(%arg0: i32) -> (i32, i32) {
    %c0_i32 = arith.constant 0 : i32
    %c0_i32_0 = arith.constant 0 : i32
    %c0_i32_1 = arith.constant 0 : i32
    return %c0_i32, %c0_i32_0 : i32, i32
  }
  func.func @transform_6(%arg0: i32) -> (i32, i32) {
    %c0_i32 = arith.constant 0 : i32
    %c0_i32_0 = arith.constant 0 : i32
    %c0_i32_1 = arith.constant 0 : i32
    return %c0_i32, %c0_i32_0 : i32, i32
  }
  func.func @transform_7(%arg0: i32) -> (i32, i32) {
    %c0_i32 = arith.constant 0 : i32
    %c0_i32_0 = arith.constant 0 : i32
    %c0_i32_1 = arith.constant 0 : i32
    return %c0_i32, %c0_i32_0 : i32, i32
  }
  func.func @transform_8(%arg0: i32) -> (i32, i32) {
    %c0_i32 = arith.constant 0 : i32
    %c0_i32_0 = arith.constant 0 : i32
    %c0_i32_1 = arith.constant 0 : i32
    return %c0_i32, %c0_i32_0 : i32, i32
  }
  func.func @transform_9(%arg0: i32) -> (i32, i32) {
    %c0_i32 = arith.constant 0 : i32
    %c0_i32_0 = arith.constant 0 : i32
    return %arg0, %c0_i32 : i32, i32
  }
}

</mosaic_0001>

<llo_original>
// kernel: critic_forward.1
$region0: #{critic_forward.1}
  #allocation0 [shape = 'u32[]', space=smem, size = 0x4, offset = 0x4, fixed_abs, tag = 'smem constant byte address 0x4 - core index']
  #allocation1 [shape = 'u32[72,128]{1,0:T(1,128)}', space=vmem, size = 0x9000, scoped, tag = 'internal scratch']
  %s0 = inlined_call_operand.hbm [shape: f32[8,32], index: 0, kind: input, shape index: {}]
  %s1 = inlined_call_operand.hbm [shape: bf16[32,256], index: 1, kind: input, shape index: {}]
  %s2 = inlined_call_operand.vmem [shape: f32[1,256], index: 2, kind: input, shape index: {}]
  %s3 = inlined_call_operand.hbm [shape: bf16[256,128], index: 3, kind: input, shape index: {}]
  %s4 = inlined_call_operand.vmem [shape: f32[1,128], index: 4, kind: input, shape index: {}]
  %s5 = inlined_call_operand.vmem [shape: bf16[128,128], index: 5, kind: input, shape index: {}]
  %s6 = inlined_call_operand.vmem [shape: f32[1,128], index: 6, kind: input, shape index: {}]
  %s7 = inlined_call_operand.vmem [shape: bf16[128,4], index: 7, kind: input, shape index: {}]
  %s8 = inlined_call_operand.vmem [shape: f32[1,4], index: 8, kind: input, shape index: {}]
  %s9 = inlined_call_operand.vmem [shape: f32[8,4], index: 9, kind: output, shape index: {}]
  %s10 = sld [smem:[#allocation0]]
  $region58: #{critic_forward.1} parent=0
    _
  %s12 = ssub.s32 1, %s10
  %s13 = scalar_select 0, %s12, %s10
  $region1: #{critic_forward.1} parent=0
    #allocation2 [shape = 'u8[4096]{0}', space=vmem, size = 0x1000, scoped, tag = 'input window, operand 0, single buffered']
    #allocation3 [shape = 's32[1]{0}', space=sflag, size = 0x4, scoped, tag = 'scoped memory for critic_forward.1']
    #allocation4 [shape = 'u8[16384]{0}', space=vmem, size = 0x4000, scoped, tag = 'input window, operand 1, single buffered']
    #allocation5 [shape = 's32[1]{0}', space=sflag, size = 0x4, scoped, tag = 'scoped memory for critic_forward.1']
    #allocation6 [shape = 'u8[65536]{0}', space=vmem, size = 0x10000, scoped, tag = 'input window, operand 3, single buffered']
    %14 = vsyncpa [#allocation3], 0
    %15 = vsyncpa [#allocation5], 0
    // Predicated region
    $region2: #{critic_forward.1} parent=1 // pred_check
      _
    $region3: #{critic_forward.1} parent=1 // pred_check_branch
      %17 = sbr.rel (0) target = $region5
    $region4: #{critic_forward.1} parent=1 // pred_region
      %19 = vsyncadd [#allocation3], 0
      %s21 = sshll.u32 %s0, 4
      %s22 = int_to_ptr.hbm [resolvable:$true] %s21
      %s23 = sshll.u32 [#allocation2], 4
      %s24 = int_to_ptr.vmem [resolvable:$true] %s23
      %26 = dma.hbm_to_vmem [thread:$0]  %s22, 128, %s24, [#allocation3]
    $region5: #{critic_forward.1} parent=1 // pred_fallthru
      _
    // Predicated region
    $region6: #{critic_forward.1} parent=1 // pred_check
      _
    $region7: #{critic_forward.1} parent=1 // pred_check_branch
      %28 = sbr.rel (0) target = $region9
    $region8: #{critic_forward.1} parent=1 // pred_region
      %30 = vsyncadd [#allocation5], 0
      %s31 = sshll.u32 %s1, 4
      %s32 = int_to_ptr.hbm [resolvable:$true] %s31
      %s33 = sshll.u32 [#allocation4], 4
      %s34 = int_to_ptr.vmem [resolvable:$true] %s33
      %39 = dma.hbm_to_vmem [thread:$0]  %s32, 512, %s34, [#allocation5], 128, 128, 8
    $region9: #{critic_forward.1} parent=1 // pred_fallthru
      _
    // Predicated region
    $region10: #{critic_forward.1} parent=1 // pred_check
      _
    $region11: #{critic_forward.1} parent=1 // pred_check_branch
      %41 = sbr.rel (0) target = $region13
    $region12: #{critic_forward.1} parent=1 // pred_region
      _
    $region13: #{critic_forward.1} parent=1 // pred_fallthru
      _
    // Predicated region
    $region14: #{critic_forward.1} parent=1 // pred_check
      _
    $region15: #{critic_forward.1} parent=1 // pred_check_branch
      %43 = sbr.rel (0) target = $region17
    $region16: #{critic_forward.1} parent=1 // pred_region
      %45 = vsyncadd [#allocation5], 0
      %s46 = sshll.u32 %s3, 4
      %s47 = int_to_ptr.hbm [resolvable:$true] %s46
      %s48 = sshll.u32 [#allocation6], 4
      %s49 = int_to_ptr.vmem [resolvable:$true] %s48
      %54 = dma.hbm_to_vmem [thread:$0]  %s47, 2048, %s49, [#allocation5], 64, 64, 4
    $region17: #{critic_forward.1} parent=1 // pred_fallthru
      _
    // Predicated region
    $region18: #{critic_forward.1} parent=1 // pred_check
      _
    $region19: #{critic_forward.1} parent=1 // pred_check_branch
      %56 = sbr.rel (0) target = $region21
    $region20: #{critic_forward.1} parent=1 // pred_region
      _
    $region21: #{critic_forward.1} parent=1 // pred_fallthru
      _
    // Predicated region
    $region22: #{critic_forward.1} parent=1 // pred_check
      _
    $region23: #{critic_forward.1} parent=1 // pred_check_branch
      %58 = sbr.rel (0) target = $region25
    $region24: #{critic_forward.1} parent=1 // pred_region
      _
    $region25: #{critic_forward.1} parent=1 // pred_fallthru
      _
    // Predicated region
    $region26: #{critic_forward.1} parent=1 // pred_check
      _
    $region27: #{critic_forward.1} parent=1 // pred_check_branch
      %60 = sbr.rel (0) target = $region29
    $region28: #{critic_forward.1} parent=1 // pred_region
      _
    $region29: #{critic_forward.1} parent=1 // pred_fallthru
      _
    // Predicated region
    $region30: #{critic_forward.1} parent=1 // pred_check
      _
    $region31: #{critic_forward.1} parent=1 // pred_check_branch
      %62 = sbr.rel (0) target = $region33
    $region32: #{critic_forward.1} parent=1 // pred_region
      _
    $region33: #{critic_forward.1} parent=1 // pred_fallthru
      _
    // Predicated region
    $region34: #{critic_forward.1} parent=1 // pred_check
      _
    $region35: #{critic_forward.1} parent=1 // pred_check_branch
      %64 = sbr.rel (0) target = $region37
    $region36: #{critic_forward.1} parent=1 // pred_region
      _
    $region37: #{critic_forward.1} parent=1 // pred_fallthru
      _
    // Predicated region
    $region38: #{critic_forward.1} parent=1 // pred_check
      _
    $region39: #{critic_forward.1} parent=1 // pred_check_branch
      %66 = sbr.rel (0) target = $region41
    $region40: #{critic_forward.1} parent=1 // pred_region
      %68 = dma.done [#allocation3], 128
    $region41: #{critic_forward.1} parent=1 // pred_fallthru
      _
    // Predicated region
    $region42: #{critic_forward.1} parent=1 // pred_check
      _
    $region43: #{critic_forward.1} parent=1 // pred_check_branch
      %70 = sbr.rel (0) target = $region45
    $region44: #{critic_forward.1} parent=1 // pred_region
      %72 = dma.done [#allocation5], 512
    $region45: #{critic_forward.1} parent=1 // pred_fallthru
      _
    // Predicated region
    $region46: #{critic_forward.1} parent=1 // pred_check
      _
    $region47: #{critic_forward.1} parent=1 // pred_check_branch
      %74 = sbr.rel (0) target = $region49
    $region48: #{critic_forward.1} parent=1 // pred_region
      %76 = dma.done [#allocation5], 2048
    $region49: #{critic_forward.1} parent=1 // pred_fallthru
      _
    %v78 = vld [vmem:[#allocation2] sm:$0xff]
    %v79 = vpack.c.bf16 %v78, %v78
    %v80 = vld [vmem:[#allocation4] sm:$0xff]
    %v81 = vld [vmem:[#allocation4 + $0x8] sm:$0xff]
    %v82 = vld [vmem:[#allocation4 + $0x10] sm:$0xff]
    %v83 = vld [vmem:[#allocation4 + $0x18] sm:$0xff]
    %v84 = vld [vmem:[%s2] sm:$0x3]
    %v86 = vperm.slane %v84, 0
    %v87 = vperm.slane %v84, 1
    %v94 = vunpack.c.l.b16 %v80
    %v95 = vunpack.c.h.b16 %v80
    %v96 = vunpack.c.l.b16 %v81
    %v97 = vunpack.c.h.b16 %v81
    %v98 = vunpack.c.l.b16 %v82
    %v99 = vunpack.c.h.b16 %v82
    %v100 = vunpack.c.l.b16 %v83
    %v101 = vunpack.c.h.b16 %v83
    %v102 = vpack.c.b16 %v96, %v94
    %v103 = vpack.c.b16 %v97, %v95
    %v104 = vpack.c.b16 %v100, %v98
    %v105 = vpack.c.b16 %v101, %v99
    %vm110 = vcmask 261120
    %v112 = vsel %vm110, %v79, 0
    %114 = vmatpush.bf16.msra.mxu0 0
    %115 = vmatpush.bf16.msra.mxu0 0
    %116 = vmatpush.bf16.msra.mxu0 0
    %117 = vmatpush.bf16.msra.mxu0 0
    %118 = vmatpush.bf16.msra.mxu0 0
    %119 = vmatpush.bf16.msra.mxu0 0
    %120 = vmatpush.bf16.msra.mxu0 %v104
    %121 = vmatpush.bf16.msra.mxu0 %v102
    %122 = vmatmul.bf16.gmra.mxu0 %v112
    %v123 = vpop.f32.mrf.mxu0
    %v124 = vadd.f32 %v86, %v123
    %v125 = vpop.f32.mrf.mxu0
    %126 = vdwg.mxu0
    %127 = vmatpush.bf16.msra.mxu0 0
    %128 = vmatpush.bf16.msra.mxu0 0
    %129 = vmatpush.bf16.msra.mxu0 0
    %130 = vmatpush.bf16.msra.mxu0 0
    %131 = vmatpush.bf16.msra.mxu0 0
    %132 = vmatpush.bf16.msra.mxu0 0
    %133 = vmatpush.bf16.msra.mxu0 %v105
    %134 = vmatpush.bf16.msra.mxu0 %v103
    %135 = vmatmul.bf16.gmra.mxu0 %v112
    %v136 = vpop.f32.mrf.mxu0
    %v137 = vadd.f32 %v87, %v136
    %v138 = vpop.f32.mrf.mxu0
    %139 = vdwg.mxu0
    %v140 = vpack.c.bf16 %v137, %v124
    %v141 = vunpack.c.l.bf16 %v140
    %v142 = vunpack.c.h.bf16 %v140
    %v143 = vmax.f32 %v141, 0.0
    %v144 = vmax.f32 %v142, 0.0
    %v145 = vpack.c.bf16 %v143, %v143
    %v146 = vpack.c.bf16 %v144, %v144
    %v147 = vld [vmem:[#allocation6] sm:$0xf]
    %v148 = vld [vmem:[#allocation6 + $0x4] sm:$0xf]
    %v149 = vld [vmem:[#allocation6 + $0x8] sm:$0xf]
    %v150 = vld [vmem:[#allocation6 + $0xc] sm:$0xf]
    %v151 = vld [vmem:[#allocation6 + $0x10] sm:$0xf]
    %v152 = vld [vmem:[#allocation6 + $0x14] sm:$0xf]
    %v153 = vld [vmem:[#allocation6 + $0x18] sm:$0xf]
    %v154 = vld [vmem:[#allocation6 + $0x1c] sm:$0xf]
    %v155 = vld [vmem:[#allocation6 + $0x20] sm:$0xf]
    %v156 = vld [vmem:[#allocation6 + $0x24] sm:$0xf]
    %v157 = vld [vmem:[#allocation6 + $0x28] sm:$0xf]
    %v158 = vld [vmem:[#allocation6 + $0x2c] sm:$0xf]
    %v159 = vld [vmem:[#allocation6 + $0x30] sm:$0xf]
    %v160 = vld [vmem:[#allocation6 + $0x34] sm:$0xf]
    %v161 = vld [vmem:[#allocation6 + $0x38] sm:$0xf]
    %v162 = vld [vmem:[#allocation6 + $0x3c] sm:$0xf]
    %v163 = vld [vmem:[#allocation6 + $0x40] sm:$0xf]
    %v164 = vld [vmem:[#allocation6 + $0x44] sm:$0xf]
    %v165 = vld [vmem:[#allocation6 + $0x48] sm:$0xf]
    %v166 = vld [vmem:[#allocation6 + $0x4c] sm:$0xf]
    %v167 = vld [vmem:[#allocation6 + $0x50] sm:$0xf]
    %v168 = vld [vmem:[#allocation6 + $0x54] sm:$0xf]
    %v169 = vld [vmem:[#allocation6 + $0x58] sm:$0xf]
    %v170 = vld [vmem:[#allocation6 + $0x5c] sm:$0xf]
    %v171 = vld [vmem:[#allocation6 + $0x60] sm:$0xf]
    %v172 = vld [vmem:[#allocation6 + $0x64] sm:$0xf]
    %v173 = vld [vmem:[#allocation6 + $0x68] sm:$0xf]
    %v174 = vld [vmem:[#allocation6 + $0x6c] sm:$0xf]
    %v175 = vld [vmem:[#allocation6 + $0x70] sm:$0xf]
    %v176 = vld [vmem:[#allocation6 + $0x74] sm:$0xf]
    %v177 = vld [vmem:[#allocation6 + $0x78] sm:$0xf]
    %v178 = vld [vmem:[#allocation6 + $0x7c] sm:$0xf]
    %v179 = vld [vmem:[%s4] sm:$0x1]
    %v181 = vperm.slane %v179, 0
    %v215 = vunpack.c.l.b16 %v147
    %v216 = vunpack.c.l.b16 %v148
    %v217 = vunpack.c.l.b16 %v149
    %v218 = vunpack.c.l.b16 %v150
    %v219 = vunpack.c.l.b16 %v151
    %v220 = vunpack.c.l.b16 %v152
    %v221 = vunpack.c.l.b16 %v153
    %v222 = vunpack.c.l.b16 %v154
    %v223 = vunpack.c.l.b16 %v155
    %v224 = vunpack.c.l.b16 %v156
    %v225 = vunpack.c.l.b16 %v157
    %v226 = vunpack.c.l.b16 %v158
    %v227 = vunpack.c.l.b16 %v159
    %v228 = vunpack.c.l.b16 %v160
    %v229 = vunpack.c.l.b16 %v161
    %v230 = vunpack.c.l.b16 %v162
    %v231 = vunpack.c.l.b16 %v163
    %v232 = vunpack.c.l.b16 %v164
    %v233 = vunpack.c.l.b16 %v165
    %v234 = vunpack.c.l.b16 %v166
    %v235 = vunpack.c.l.b16 %v167
    %v236 = vunpack.c.l.b16 %v168
    %v237 = vunpack.c.l.b16 %v169
    %v238 = vunpack.c.l.b16 %v170
    %v239 = vunpack.c.l.b16 %v171
    %v240 = vunpack.c.l.b16 %v172
    %v241 = vunpack.c.l.b16 %v173
    %v242 = vunpack.c.l.b16 %v174
    %v243 = vunpack.c.l.b16 %v175
    %v244 = vunpack.c.l.b16 %v176
    %v245 = vunpack.c.l.b16 %v177
    %v246 = vunpack.c.l.b16 %v178
    %v247 = vpack.c.b16 %v216, %v215
    %v248 = vpack.c.b16 %v218, %v217
    %v249 = vpack.c.b16 %v220, %v219
    %v250 = vpack.c.b16 %v222, %v221
    %v251 = vpack.c.b16 %v224, %v223
    %v252 = vpack.c.b16 %v226, %v225
    %v253 = vpack.c.b16 %v228, %v227
    %v254 = vpack.c.b16 %v230, %v229
    %v255 = vpack.c.b16 %v232, %v231
    %v256 = vpack.c.b16 %v234, %v233
    %v257 = vpack.c.b16 %v236, %v235
    %v258 = vpack.c.b16 %v238, %v237
    %v259 = vpack.c.b16 %v240, %v239
    %v260 = vpack.c.b16 %v242, %v241
    %v261 = vpack.c.b16 %v244, %v243
    %v262 = vpack.c.b16 %v246, %v245
    %279 = vmatpush.bf16.msra.mxu0 %v254
    %280 = vmatpush.bf16.msra.mxu0 %v253
    %281 = vmatpush.bf16.msra.mxu0 %v252
    %282 = vmatpush.bf16.msra.mxu0 %v251
    %283 = vmatpush.bf16.msra.mxu0 %v250
    %284 = vmatpush.bf16.msra.mxu0 %v249
    %285 = vmatpush.bf16.msra.mxu0 %v248
    %286 = vmatpush.bf16.msra.mxu0 %v247
    %287 = vmatmul.bf16.gmra.mxu0 %v145
    %v288 = vpop.f32.mrf.mxu0
    %v289 = vadd.f32 %v181, %v288
    %v290 = vpop.f32.mrf.mxu0
    %291 = vdwg.mxu0
    %292 = vmatpush.bf16.msra.mxu0 %v262
    %293 = vmatpush.bf16.msra.mxu0 %v261
    %294 = vmatpush.bf16.msra.mxu0 %v260
    %295 = vmatpush.bf16.msra.mxu0 %v259
    %296 = vmatpush.bf16.msra.mxu0 %v258
    %297 = vmatpush.bf16.msra.mxu0 %v257
    %298 = vmatpush.bf16.msra.mxu0 %v256
    %299 = vmatpush.bf16.msra.mxu0 %v255
    %300 = vmatmul.bf16.gmra.mxu0 %v146
    %v301 = vpop.f32.mrf.mxu0
    %v302 = vadd.f32 %v289, %v301
    %v303 = vpop.f32.mrf.mxu0
    %304 = vdwg.mxu0
    %v305 = vpack.c.bf16 %v302, %v302
    %v306 = vunpack.c.l.bf16 %v305
    %v307 = vmax.f32 %v306, 0.0
    %v308 = vpack.c.bf16 %v307, %v307
    %v309 = vld [vmem:[%s5] sm:$0xf]
    %v310 = vld [vmem:[%s5 + $0x4] sm:$0xf]
    %v311 = vld [vmem:[%s5 + $0x8] sm:$0xf]
    %v312 = vld [vmem:[%s5 + $0xc] sm:$0xf]
    %v313 = vld [vmem:[%s5 + $0x10] sm:$0xf]
    %v314 = vld [vmem:[%s5 + $0x14] sm:$0xf]
    %v315 = vld [vmem:[%s5 + $0x18] sm:$0xf]
    %v316 = vld [vmem:[%s5 + $0x1c] sm:$0xf]
    %v317 = vld [vmem:[%s5 + $0x20] sm:$0xf]
    %v318 = vld [vmem:[%s5 + $0x24] sm:$0xf]
    %v319 = vld [vmem:[%s5 + $0x28] sm:$0xf]
    %v320 = vld [vmem:[%s5 + $0x2c] sm:$0xf]
    %v321 = vld [vmem:[%s5 + $0x30] sm:$0xf]
    %v322 = vld [vmem:[%s5 + $0x34] sm:$0xf]
    %v323 = vld [vmem:[%s5 + $0x38] sm:$0xf]
    %v324 = vld [vmem:[%s5 + $0x3c] sm:$0xf]
    %v325 = vld [vmem:[%s6] sm:$0x1]
    %v327 = vperm.slane %v325, 0
    %v345 = vunpack.c.l.b16 %v309
    %v346 = vunpack.c.l.b16 %v310
    %v347 = vunpack.c.l.b16 %v311
    %v348 = vunpack.c.l.b16 %v312
    %v349 = vunpack.c.l.b16 %v313
    %v350 = vunpack.c.l.b16 %v314
    %v351 = vunpack.c.l.b16 %v315
    %v352 = vunpack.c.l.b16 %v316
    %v353 = vunpack.c.l.b16 %v317
    %v354 = vunpack.c.l.b16 %v318
    %v355 = vunpack.c.l.b16 %v319
    %v356 = vunpack.c.l.b16 %v320
    %v357 = vunpack.c.l.b16 %v321
    %v358 = vunpack.c.l.b16 %v322
    %v359 = vunpack.c.l.b16 %v323
    %v360 = vunpack.c.l.b16 %v324
    %v361 = vpack.c.b16 %v346, %v345
    %v362 = vpack.c.b16 %v348, %v347
    %v363 = vpack.c.b16 %v350, %v349
    %v364 = vpack.c.b16 %v352, %v351
    %v365 = vpack.c.b16 %v354, %v353
    %v366 = vpack.c.b16 %v356, %v355
    %v367 = vpack.c.b16 %v358, %v357
    %v368 = vpack.c.b16 %v360, %v359
    %377 = vmatpush.bf16.msra.mxu0 %v368
    %378 = vmatpush.bf16.msra.mxu0 %v367
    %379 = vmatpush.bf16.msra.mxu0 %v366
    %380 = vmatpush.bf16.msra.mxu0 %v365
    %381 = vmatpush.bf16.msra.mxu0 %v364
    %382 = vmatpush.bf16.msra.mxu0 %v363
    %383 = vmatpush.bf16.msra.mxu0 %v362
    %384 = vmatpush.bf16.msra.mxu0 %v361
    %385 = vmatmul.bf16.gmra.mxu0 %v308
    %v386 = vpop.f32.mrf.mxu0
    %v387 = vadd.f32 %v327, %v386
    %v388 = vpop.f32.mrf.mxu0
    %389 = vdwg.mxu0
    %v390 = vpack.c.bf16 %v387, %v387
    %v391 = vunpack.c.l.bf16 %v390
    %v392 = vmax.f32 %v391, 0.0
    %v393 = vpack.c.bf16 %v392, %v392
    %v394 = vld [vmem:[%s7] sm:$0xf]
    %v395 = vld [vmem:[%s7 + $0x4] sm:$0xf]
    %v396 = vld [vmem:[%s7 + $0x8] sm:$0xf]
    %v397 = vld [vmem:[%s7 + $0xc] sm:$0xf]
    %v398 = vld [vmem:[%s7 + $0x10] sm:$0xf]
    %v399 = vld [vmem:[%s7 + $0x14] sm:$0xf]
    %v400 = vld [vmem:[%s7 + $0x18] sm:$0xf]
    %v401 = vld [vmem:[%s7 + $0x1c] sm:$0xf]
    %v402 = vld [vmem:[%s7 + $0x20] sm:$0xf]
    %v403 = vld [vmem:[%s7 + $0x24] sm:$0xf]
    %v404 = vld [vmem:[%s7 + $0x28] sm:$0xf]
    %v405 = vld [vmem:[%s7 + $0x2c] sm:$0xf]
    %v406 = vld [vmem:[%s7 + $0x30] sm:$0xf]
    %v407 = vld [vmem:[%s7 + $0x34] sm:$0xf]
    %v408 = vld [vmem:[%s7 + $0x38] sm:$0xf]
    %v409 = vld [vmem:[%s7 + $0x3c] sm:$0xf]
    %v410 = vld [vmem:[%s8] sm:$0x1]
    %v412 = vperm.slane %v410, 0
    %v430 = vunpack.c.l.b16 %v394
    %v431 = vunpack.c.l.b16 %v395
    %v432 = vunpack.c.l.b16 %v396
    %v433 = vunpack.c.l.b16 %v397
    %v434 = vunpack.c.l.b16 %v398
    %v435 = vunpack.c.l.b16 %v399
    %v436 = vunpack.c.l.b16 %v400
    %v437 = vunpack.c.l.b16 %v401
    %v438 = vunpack.c.l.b16 %v402
    %v439 = vunpack.c.l.b16 %v403
    %v440 = vunpack.c.l.b16 %v404
    %v441 = vunpack.c.l.b16 %v405
    %v442 = vunpack.c.l.b16 %v406
    %v443 = vunpack.c.l.b16 %v407
    %v444 = vunpack.c.l.b16 %v408
    %v445 = vunpack.c.l.b16 %v409
    %v446 = vpack.c.b16 %v431, %v430
    %v447 = vpack.c.b16 %v433, %v432
    %v448 = vpack.c.b16 %v435, %v434
    %v449 = vpack.c.b16 %v437, %v436
    %v450 = vpack.c.b16 %v439, %v438
    %v451 = vpack.c.b16 %v441, %v440
    %v452 = vpack.c.b16 %v443, %v442
    %v453 = vpack.c.b16 %v445, %v444
    %462 = vmatpush.bf16.msra.mxu0 %v453
    %463 = vmatpush.bf16.msra.mxu0 %v452
    %464 = vmatpush.bf16.msra.mxu0 %v451
    %465 = vmatpush.bf16.msra.mxu0 %v450
    %466 = vmatpush.bf16.msra.mxu0 %v449
    %467 = vmatpush.bf16.msra.mxu0 %v448
    %468 = vmatpush.bf16.msra.mxu0 %v447
    %469 = vmatpush.bf16.msra.mxu0 %v446
    %470 = vmatmul.bf16.gmra.mxu0 %v393
    %v471 = vpop.f32.mrf.mxu0
    %v472 = vadd.f32 %v412, %v471
    %v473 = vpop.f32.mrf.mxu0
    %474 = vdwg.mxu0
    %vm475 = vcmask 31744
    %476 = vst.msk [vmem:[%s9] sm:$0xff] %vm475, %v472
    // Predicated region
    $region50: #{critic_forward.1} parent=1 // pred_check
      _
    $region51: #{critic_forward.1} parent=1 // pred_check_branch
      %478 = sbr.rel (0) target = $region53
    $region52: #{critic_forward.1} parent=1 // pred_region
      _
    $region53: #{critic_forward.1} parent=1 // pred_fallthru
      _
    // Predicated region
    $region54: #{critic_forward.1} parent=1 // pred_check
      _
    $region55: #{critic_forward.1} parent=1 // pred_check_branch
      %480 = sbr.rel (0) target = $region57
    $region56: #{critic_forward.1} parent=1 // pred_region
      _
    $region57: #{critic_forward.1} parent=1 // pred_fallthru
      _
    %481 = vsyncpa [#allocation3], 1
    %482 = vsyncpa [#allocation5], 1

</llo_original>
